<compile_context>
chip_gen: v7x
topology: tpu7x:2x2x1
jax: 0.10.0
libtpu: 0.0.40
codegen_flags: <defaults>
</compile_context>

<pallas_src>
import jax
import jax.numpy as jnp
from jax import lax
from jax.experimental import pallas as pl
from jax.experimental.pallas import tpu as pltpu


def _patch_embed_kernel(p_ref, w_ref, pos_ref, cls_ref, o_ref):
    # p_ref:   (1, N, K)       bf16  one image's patch matrix
    # w_ref:   (K, E_pad)      bf16  projection weight       (VMEM-resident)
    # pos_ref: (N, E_pad)      f32   pos_embed[1:] + conv_b  (VMEM-resident)
    # cls_ref: (1, E_pad)      f32   cls_token + pos_embed[0](VMEM-resident)
    # o_ref:   (1, N+1, E_pad) f32   output tokens for this image
    n = pos_ref.shape[0]
    acc = jnp.dot(p_ref[0], w_ref[...], preferred_element_type=jnp.float32)
    # Row 0: cls token (+ its positional embedding).
    o_ref[0, 0:1, :] = cls_ref[...].astype(o_ref.dtype)
    # Rows 1..N: projected patches + (pos embedding + conv bias).
    o_ref[0, pl.ds(1, n), :] = (acc + pos_ref[...]).astype(o_ref.dtype)


def patch_embedding(x, conv_w, conv_b, cls_token, pos_embed, patch_size):
    """x: (B, C, H, W) f32. Returns (B, num_patches + 1, E) f32."""
    B, C, H, W = x.shape
    E = conv_w.shape[0]
    P = patch_size
    Hn, Wn = H // P, W // P
    N = Hn * Wn
    K = C * P * P
    E_pad = ((E + 127) // 128) * 128  # lane-dense output (no-op for E=768)

    # ---- glue: non-overlapping patches -> (B, N, K), K ordered (c, ph, pw)
    # to match the Conv2d OIHW weight layout.  TODO(synk): fuse into kernel.
    patches = x.reshape(B, C, Hn, P, Wn, P)
    patches = jnp.transpose(patches, (0, 2, 4, 1, 3, 5)).reshape(B, N, K)
    patches = patches.astype(jnp.bfloat16)

    # Conv2d weight (E, C, P, P) -> (K, E_pad) bf16, zero-padded columns.
    w_mat = conv_w.reshape(E, K).T.astype(jnp.bfloat16)
    # Patch positional embedding with the conv bias folded in (f32 epilogue).
    pos_patch = pos_embed[0, 1:, :] + conv_b[None, :]            # (N, E)
    # cls token + its positional embedding (row 0 of every image's output).
    cls_row = (cls_token[0, 0, :] + pos_embed[0, 0, :])[None, :]  # (1, E)
    if E_pad != E:
        pad = ((0, 0), (0, E_pad - E))
        w_mat = jnp.pad(w_mat, pad)
        pos_patch = jnp.pad(pos_patch, pad)
        cls_row = jnp.pad(cls_row, pad)

    cost = pl.CostEstimate(
        flops=2 * B * N * K * E_pad,
        transcendentals=0,
        bytes_accessed=int(
            patches.size * 2 + w_mat.size * 2
            + pos_patch.size * 4 + cls_row.size * 4
            + B * (N + 1) * E_pad * 4),
    )

    out_pad = pl.pallas_call(
        _patch_embed_kernel,
        out_shape=jax.ShapeDtypeStruct((B, N + 1, E_pad), jnp.float32),
        grid_spec=pltpu.PrefetchScalarGridSpec(
            num_scalar_prefetch=0,
            grid=(B,),
            in_specs=[
                pl.BlockSpec((1, N, K), lambda b: (b, 0, 0)),      # per-image
                pl.BlockSpec((K, E_pad), lambda b: (0, 0)),        # resident
                pl.BlockSpec((N, E_pad), lambda b: (0, 0)),        # resident
                pl.BlockSpec((1, E_pad), lambda b: (0, 0)),        # resident
            ],
            out_specs=pl.BlockSpec((1, N + 1, E_pad), lambda b: (b, 0, 0)),
        ),
        compiler_params=pltpu.CompilerParams(
            dimension_semantics=("parallel",)),
        cost_estimate=cost,
    )(patches, w_mat, pos_patch, cls_row)

    out = out_pad if E_pad == E else out_pad[:, :, :E]
    return out.astype(x.dtype)                                    # (B, N+1, E)


def _reference(x, conv_w, conv_b, cls_token, pos_embed, patch_size):
    """Pure-JAX reference mirroring the PyTorch forward (NCHW conv)."""
    B = x.shape[0]
    E = conv_w.shape[0]
    y = lax.conv_general_dilated(
        x, conv_w,
        window_strides=(patch_size, patch_size),
        padding="VALID",
        dimension_numbers=("NCHW", "OIHW", "NCHW"),
    ) + conv_b.reshape(1, E, 1, 1)
    y = y.reshape(B, E, -1)                # flatten(2)
    y = jnp.transpose(y, (0, 2, 1))        # transpose(1, 2) -> (B, N, E)
    cls = jnp.broadcast_to(cls_token, (B, 1, E))
    y = jnp.concatenate([cls, y], axis=1)
    return y + pos_embed


if __name__ == "__main__":
    # Small ViT-ish shapes consistent with the module's forward.
    B, C, H, W = 2, 4, 16, 16
    P = 4
    E = 32
    N = (H // P) * (W // P)                # 16 patches

    key = jax.random.PRNGKey(0)
    k_x, k_w, k_b, k_cls, k_pos = jax.random.split(key, 5)

    x = jax.random.normal(k_x, (B, C, H, W), dtype=jnp.float32)
    conv_w = jax.random.normal(k_w, (E, C, P, P), dtype=jnp.float32) * 0.02
    conv_b = jax.random.normal(k_b, (E,), dtype=jnp.float32) * 0.02
    cls_token = jax.random.normal(k_cls, (1, 1, E), dtype=jnp.float32)
    pos_embed = jax.random.normal(k_pos, (1, N + 1, E), dtype=jnp.float32)

    out = patch_embedding(x, conv_w, conv_b, cls_token, pos_embed, P)
    out = jax.block_until_ready(out)

    ref = _reference(x, conv_w, conv_b, cls_token, pos_embed, P)
    ref = jax.block_until_ready(ref)

    assert out.shape == (B, N + 1, E), out.shape
    # bf16 operands with f32 accumulation -> small rounding vs f32 reference.
    assert jnp.allclose(out, ref, atol=1e-2, rtol=1e-2), "mismatch vs reference"

    print("KERNEL_OK")
</pallas_src>

<mosaic_0001>
module attributes {stable_mosaic.version = 11 : i64} {
  func.func @_patch_embed_kernel(%arg0: i32, %arg1: memref<1x16x64xbf16, #tpu.memory_space<vmem>>, %arg2: memref<64x128xbf16, #tpu.memory_space<vmem>>, %arg3: memref<16x128xf32, #tpu.memory_space<vmem>>, %arg4: memref<1x128xf32, #tpu.memory_space<vmem>>, %arg5: memref<1x17x128xf32, #tpu.memory_space<vmem>>) attributes {dimension_semantics = [#tpu.dimension_semantics<parallel>], iteration_bounds = array<i64: 2>, scalar_prefetch = 0 : i64, scratch_operands = 0 : i64, tpu.core_type = #tpu.core_type<tc>, window_params = [{transform_indices = @transform_0, window_bounds = array<i64: 1, 16, 64>}, {pipeline_mode = #tpu.pipeline_mode<synchronous>, transform_indices = @transform_1, window_bounds = array<i64: 64, 128>}, {pipeline_mode = #tpu.pipeline_mode<synchronous>, transform_indices = @transform_2, window_bounds = array<i64: 16, 128>}, {pipeline_mode = #tpu.pipeline_mode<synchronous>, transform_indices = @transform_3, window_bounds = array<i64: 1, 128>}, {transform_indices = @transform_4, window_bounds = array<i64: 1, 17, 128>}]} {
    %c0 = arith.constant 0 : index
    %c0_0 = arith.constant 0 : index
    %c0_1 = arith.constant 0 : index
    %0 = vector.load %arg1[%c0, %c0_0, %c0_1] : memref<1x16x64xbf16, #tpu.memory_space<vmem>>, vector<1x16x64xbf16>
    %1 = vector.shape_cast %0 : vector<1x16x64xbf16> to vector<16x64xbf16>
    %c0_2 = arith.constant 0 : index
    %c0_3 = arith.constant 0 : index
    %2 = vector.load %arg2[%c0_2, %c0_3] : memref<64x128xbf16, #tpu.memory_space<vmem>>, vector<64x128xbf16>
    %cst = arith.constant dense<0.000000e+00> : vector<16x128xf32>
    %3 = tpu.matmul %1, %2, %cst {dimension_numbers = #tpu.dot_dimension_numbers<[1], [0], [0], [1], [0, 0, 1, 1], [], []>} : vector<16x64xbf16>, vector<64x128xbf16>, vector<16x128xf32> -> vector<16x128xf32>
    %c0_4 = arith.constant 0 : index
    %c0_5 = arith.constant 0 : index
    %4 = vector.load %arg4[%c0_4, %c0_5] : memref<1x128xf32, #tpu.memory_space<vmem>>, vector<1x128xf32>
    %c0_6 = arith.constant 0 : index
    %c0_7 = arith.constant 0 : index
    %c0_8 = arith.constant 0 : index
    %5 = vector.load %arg5[%c0_6, %c0_7, %c0_8] : memref<1x17x128xf32, #tpu.memory_space<vmem>>, vector<1x1x128xf32>
    %6 = vector.shape_cast %5 : vector<1x1x128xf32> to vector<1x128xf32>
    %7 = vector.shape_cast %4 : vector<1x128xf32> to vector<1x1x128xf32>
    tpu.vector_store %arg5[%c0_6, %c0_7, %c0_8], %7 {strides = array<i32>} : memref<1x17x128xf32, #tpu.memory_space<vmem>>, vector<1x1x128xf32>,
    %c0_9 = arith.constant 0 : index
    %c0_10 = arith.constant 0 : index
    %8 = vector.load %arg3[%c0_9, %c0_10] : memref<16x128xf32, #tpu.memory_space<vmem>>, vector<16x128xf32>
    %9 = arith.addf %3, %8 : vector<16x128xf32>
    %c0_11 = arith.constant 0 : index
    %c1 = arith.constant 1 : index
    %c0_12 = arith.constant 0 : index
    %10 = vector.load %arg5[%c0_11, %c1, %c0_12] : memref<1x17x128xf32, #tpu.memory_space<vmem>>, vector<1x16x128xf32>
    %11 = vector.shape_cast %10 : vector<1x16x128xf32> to vector<16x128xf32>
    %12 = vector.shape_cast %9 : vector<16x128xf32> to vector<1x16x128xf32>
    tpu.vector_store %arg5[%c0_11, %c1, %c0_12], %12 {strides = array<i32>} : memref<1x17x128xf32, #tpu.memory_space<vmem>>, vector<1x16x128xf32>,
    return
  }
  func.func @transform_0(%arg0: i32) -> (i32, i32, i32) {
    %c0_i32 = arith.constant 0 : i32
    %c0_i32_0 = arith.constant 0 : i32
    %c0_i32_1 = arith.constant 0 : i32
    return %arg0, %c0_i32, %c0_i32_0 : i32, i32, i32
  }
  func.func @transform_1(%arg0: i32) -> (i32, i32) {
    %c0_i32 = arith.constant 0 : i32
    %c0_i32_0 = arith.constant 0 : i32
    %c0_i32_1 = arith.constant 0 : i32
    return %c0_i32, %c0_i32_0 : i32, i32
  }
  func.func @transform_2(%arg0: i32) -> (i32, i32) {
    %c0_i32 = arith.constant 0 : i32
    %c0_i32_0 = arith.constant 0 : i32
    %c0_i32_1 = arith.constant 0 : i32
    return %c0_i32, %c0_i32_0 : i32, i32
  }
  func.func @transform_3(%arg0: i32) -> (i32, i32) {
    %c0_i32 = arith.constant 0 : i32
    %c0_i32_0 = arith.constant 0 : i32
    %c0_i32_1 = arith.constant 0 : i32
    return %c0_i32, %c0_i32_0 : i32, i32
  }
  func.func @transform_4(%arg0: i32) -> (i32, i32, i32) {
    %c0_i32 = arith.constant 0 : i32
    %c0_i32_0 = arith.constant 0 : i32
    %c0_i32_1 = arith.constant 0 : i32
    return %arg0, %c0_i32, %c0_i32_0 : i32, i32, i32
  }
}

</mosaic_0001>

<llo_original>
// kernel: tpu_custom_call.1
$region0: #{tpu_custom_call.1}
  #allocation0 [shape = 'u32[]', space=smem, size = 0x4, offset = 0x4, fixed_abs, tag = 'smem constant byte address 0x4 - core index']
  #allocation1 [shape = 'u32[144,128]{1,0:T(1,128)}', space=vmem, size = 0x12000, scoped, tag = 'internal scratch']
  %s0 = inlined_call_operand.hbm [shape: bf16[2,16,64], index: 0, kind: input, shape index: {}]
  %s1 = inlined_call_operand.hbm [shape: bf16[64,128], index: 1, kind: input, shape index: {}]
  %s2 = inlined_call_operand.hbm [shape: f32[16,128], index: 2, kind: input, shape index: {}]
  %s3 = inlined_call_operand.vmem [shape: f32[1,128], index: 3, kind: input, shape index: {}]
  %s4 = inlined_call_operand.vmem [shape: f32[2,17,128], index: 4, kind: output, shape index: {}]
  %s5 = sld [smem:[#allocation0]]
  $region61: #{tpu_custom_call.1} parent=0
    _
  %s7 = ssub.s32 1, %s5
  %s8 = scalar_select 0, %s7, %s5
  $region1: #{tpu_custom_call.1} parent=0
    #allocation2 [shape = 'u8[8192]{0}', space=vmem, size = 0x2000, scoped, tag = 'input window, operand 0']
    #allocation3 [shape = 's32[2]{0}', space=sflag, size = 0x8, scoped, tag = 'scoped memory for tpu_custom_call.1']
    #allocation4 [shape = 'u8[16384]{0}', space=vmem, size = 0x4000, scoped, tag = 'input window, operand 1, single buffered']
    #allocation5 [shape = 's32[1]{0}', space=sflag, size = 0x4, scoped, tag = 'scoped memory for tpu_custom_call.1']
    #allocation6 [shape = 'u8[8192]{0}', space=vmem, size = 0x2000, scoped, tag = 'input window, operand 2, single buffered']
    %9 = vsyncpa [#allocation3], 0
    %s10 = scalar_lea.sflag [#allocation3], 1
    %11 = vsyncpa %s10, 0
    %12 = vsyncpa [#allocation5], 0
    loop: start=0, step=1, limit=4
    $region2: #{tpu_custom_call.1} parent=1 // loop_pre_header
      _
    $region3: #{tpu_custom_call.1} parent=1 // loop_header
      %s14 = sphi 0, %s18
      %p15 = scmp.ge.s32.totalorder %s14, 4
      %s24 = sphi 0, %s26
      %s27 = sphi 0, %s24
      %s28 = sphi 0, %s27
      %s44 = sphi 0, %s28
      %s48 = sphi 0, %s48
      %s50 = sphi 0, %s48
      %s51 = sphi 0, %s50
      %s65 = sphi 0, %s51
      %s69 = sphi 0, %s69
      %s71 = sphi 0, %s69
      %s72 = sphi 0, %s71
      %s86 = sphi 0, %s72
      %s90 = sphi 0, %s90
      %s92 = sphi 0, %s90
      %s93 = sphi 0, %s92
      %s107 = sphi 0, %s93
      %s113 = sphi 0, %s115
      %s116 = sphi 0, %s113
      %s117 = sphi 0, %s116
      %s133 = sphi 0, %s117
    $region4: #{tpu_custom_call.1} parent=1 // loop_header_branch
      %17 = sbr.rel (%p15) target = $region8
    $region5: #{tpu_custom_call.1} parent=1 // loop_body
      %s19 = ssub.s32 %s14, 1
      %s20 = ssub.s32 %s14, 2
      %s21 = sadd.s32 %s14, 1
      %s22 = ssub.s32 %s14, %s21
      %p23 = scmp.eq.s32.totalorder %s22, 0
      %s25 = sadd.s32 %s24, 1
      %s26 = scalar_select %p23, %s24, %s25
      %p29 = pneg %p23
      %p30 = scmp.eq.s32.totalorder %s14, 1
      %p31 = por %p29, %p30
      %p32 = scmp.ne.s32.totalorder %s24, %s27
      %p33 = scmp.eq.s32.totalorder %s14, 0
      %p34 = por %p32, %p33
      %p35 = scmp.ne.s32.totalorder %s24, %s27
      %p36 = scmp.eq.s32.totalorder %s19, 1
      %p37 = por %p35, %p36
      %p38 = scmp.ne.s32.totalorder %s27, %s28
      %p39 = scmp.eq.s32.totalorder %s19, 0
      %p40 = por %p38, %p39
      %p41 = scmp.ne.s32.totalorder %s27, %s28
      %p42 = scmp.eq.s32.totalorder %s20, 1
      %p43 = por %p41, %p42
      %p45 = scmp.ne.s32.totalorder %s28, %s44
      %p46 = scmp.eq.s32.totalorder %s20, 0
      %p47 = por %p45, %p46
      %s49 = sadd.s32 %s48, 1
      %p52 = scmp.eq.s32.totalorder %s14, 1
      %p53 = scmp.ne.s32.totalorder %s48, %s50
      %p54 = scmp.eq.s32.totalorder %s14, 0
      %p55 = por %p53, %p54
      %p56 = scmp.ne.s32.totalorder %s48, %s50
      %p57 = scmp.eq.s32.totalorder %s19, 1
      %p58 = por %p56, %p57
      %p59 = scmp.ne.s32.totalorder %s50, %s51
      %p60 = scmp.eq.s32.totalorder %s19, 0
      %p61 = por %p59, %p60
      %p62 = scmp.ne.s32.totalorder %s50, %s51
      %p63 = scmp.eq.s32.totalorder %s20, 1
      %p64 = por %p62, %p63
      %p66 = scmp.ne.s32.totalorder %s51, %s65
      %p67 = scmp.eq.s32.totalorder %s20, 0
      %p68 = por %p66, %p67
      %s70 = sadd.s32 %s69, 1
      %p73 = scmp.eq.s32.totalorder %s14, 1
      %p74 = scmp.ne.s32.totalorder %s69, %s71
      %p75 = scmp.eq.s32.totalorder %s14, 0
      %p76 = por %p74, %p75
      %p77 = scmp.ne.s32.totalorder %s69, %s71
      %p78 = scmp.eq.s32.totalorder %s19, 1
      %p79 = por %p77, %p78
      %p80 = scmp.ne.s32.totalorder %s71, %s72
      %p81 = scmp.eq.s32.totalorder %s19, 0
      %p82 = por %p80, %p81
      %p83 = scmp.ne.s32.totalorder %s71, %s72
      %p84 = scmp.eq.s32.totalorder %s20, 1
      %p85 = por %p83, %p84
      %p87 = scmp.ne.s32.totalorder %s72, %s86
      %p88 = scmp.eq.s32.totalorder %s20, 0
      %p89 = por %p87, %p88
      %s91 = sadd.s32 %s90, 1
      %p94 = scmp.eq.s32.totalorder %s14, 1
      %p95 = scmp.ne.s32.totalorder %s90, %s92
      %p96 = scmp.eq.s32.totalorder %s14, 0
      %p97 = por %p95, %p96
      %p98 = scmp.ne.s32.totalorder %s90, %s92
      %p99 = scmp.eq.s32.totalorder %s19, 1
      %p100 = por %p98, %p99
      %p101 = scmp.ne.s32.totalorder %s92, %s93
      %p102 = scmp.eq.s32.totalorder %s19, 0
      %p103 = por %p101, %p102
      %p104 = scmp.ne.s32.totalorder %s92, %s93
      %p105 = scmp.eq.s32.totalorder %s20, 1
      %p106 = por %p104, %p105
      %p108 = scmp.ne.s32.totalorder %s93, %s107
      %p109 = scmp.eq.s32.totalorder %s20, 0
      %p110 = por %p108, %p109
      %s111 = ssub.s32 %s14, %s21
      %p112 = scmp.eq.s32.totalorder %s111, 0
      %s114 = sadd.s32 %s113, 1
      %s115 = scalar_select %p112, %s113, %s114
      %p118 = pneg %p112
      %p119 = scmp.eq.s32.totalorder %s14, 1
      %p120 = por %p118, %p119
      %p121 = scmp.ne.s32.totalorder %s113, %s116
      %p122 = scmp.eq.s32.totalorder %s14, 0
      %p123 = por %p121, %p122
      %p124 = scmp.ne.s32.totalorder %s113, %s116
      %p125 = scmp.eq.s32.totalorder %s19, 1
      %p126 = por %p124, %p125
      %p127 = scmp.ne.s32.totalorder %s116, %s117
      %p128 = scmp.eq.s32.totalorder %s19, 0
      %p129 = por %p127, %p128
      %p130 = scmp.ne.s32.totalorder %s116, %s117
      %p131 = scmp.eq.s32.totalorder %s20, 1
      %p132 = por %p130, %p131
      %p134 = scmp.ne.s32.totalorder %s117, %s133
      %p135 = scmp.eq.s32.totalorder %s20, 0
      %p136 = por %p134, %p135
      %p137 = scmp.le.s32.totalorder 1, %s14
      %p138 = scmp.lt.s32.totalorder %s14, 3
      %p139 = pnand %p137, %p138
      %p140 = pneg %p139
      // Predicated region
      $region9: #{tpu_custom_call.1} parent=5 // pred_check
        _
      $region10: #{tpu_custom_call.1} parent=5 // pred_check_branch
        %142 = sbr.rel (%p139) target = $region12
      $region11: #{tpu_custom_call.1} parent=5 // pred_region
        %s143 = ssub.s32 %s14, 1
        // Predicated region
        $region13: #{tpu_custom_call.1} parent=11 // pred_check
          %p144 = pneg %p61
        $region14: #{tpu_custom_call.1} parent=11 // pred_check_branch
          %146 = sbr.rel (%p144) target = $region16
        $region15: #{tpu_custom_call.1} parent=11 // pred_region
          %s148 = ssub.s32 512, 512
          %149 = vsyncadd [#allocation5], %s148
          %s150 = sshll.u32 [#allocation4], 4
          %s151 = int_to_ptr.vmem [resolvable:$true] %s150
          %156 = dma.hbm_to_vmem [thread:$0]  %s1, 512, %s151, [#allocation5], 64, 64, 4
        $region16: #{tpu_custom_call.1} parent=11 // pred_fallthru
          _
        // Predicated region
        $region17: #{tpu_custom_call.1} parent=11 // pred_check
          %p157 = pneg %p82
        $region18: #{tpu_custom_call.1} parent=11 // pred_check_branch
          %159 = sbr.rel (%p157) target = $region20
        $region19: #{tpu_custom_call.1} parent=11 // pred_region
          %s161 = ssub.s32 256, 256
          %162 = vsyncadd [#allocation5], %s161
          %s163 = sshll.u32 [#allocation6], 4
          %s164 = int_to_ptr.vmem [resolvable:$true] %s163
          %169 = dma.hbm_to_vmem [thread:$0]  %s2, 256, %s164, [#allocation5], 128, 128, 8
        $region20: #{tpu_custom_call.1} parent=11 // pred_fallthru
          _
        // Predicated region
        $region21: #{tpu_custom_call.1} parent=11 // pred_check
          %p170 = pneg %p103
        $region22: #{tpu_custom_call.1} parent=11 // pred_check_branch
          %172 = sbr.rel (%p170) target = $region24
        $region23: #{tpu_custom_call.1} parent=11 // pred_region
          _
        $region24: #{tpu_custom_call.1} parent=11 // pred_fallthru
          _
      $region12: #{tpu_custom_call.1} parent=5 // pred_fallthru
        _
      %p173 = scmp.lt.s32.totalorder %s14, 2
      // Predicated region
      $region25: #{tpu_custom_call.1} parent=5 // pred_check
        %p174 = pneg %p173
      $region26: #{tpu_custom_call.1} parent=5 // pred_check_branch
        %176 = sbr.rel (%p174) target = $region28
      $region27: #{tpu_custom_call.1} parent=5 // pred_region
        // Predicated region
        $region29: #{tpu_custom_call.1} parent=27 // pred_check
          %p177 = pneg %p34
        $region30: #{tpu_custom_call.1} parent=27 // pred_check_branch
          %179 = sbr.rel (%p177) target = $region32
        $region31: #{tpu_custom_call.1} parent=27 // pred_region
          %s180 = sand.u32 %s24, 1
          %s181 = scalar_lea.sflag [#allocation3], %s180
          %s182 = sand.u32 %s24, 1
          %s183 = smul.addr %s182, 8
          %s184 = scalar_lea.vmem [#allocation2], %s183
          %s186 = ssub.s32 128, 128
          %187 = vsyncadd %s181, %s186
          %s188 = smul.addr %s14, 2
          %s189 = smul.addr %s188, 64
          %s190 = scalar_lea.hbm %s0, %s189
          %s191 = sshll.u32 %s184, 4
          %s192 = int_to_ptr.vmem [resolvable:$true] %s191
          %197 = dma.hbm_to_vmem [thread:$0]  %s190, 128, %s192, %s181, 64, 64, 4
        $region32: #{tpu_custom_call.1} parent=27 // pred_fallthru
          _
      $region28: #{tpu_custom_call.1} parent=5 // pred_fallthru
        _
      %p198 = scmp.le.s32.totalorder 1, %s14
      %p199 = scmp.lt.s32.totalorder %s14, 3
      %p200 = pnand %p198, %p199
      %p201 = pneg %p200
      // Predicated region
      $region33: #{tpu_custom_call.1} parent=5 // pred_check
        _
      $region34: #{tpu_custom_call.1} parent=5 // pred_check_branch
        %203 = sbr.rel (%p200) target = $region36
      $region35: #{tpu_custom_call.1} parent=5 // pred_region
        %s204 = ssub.s32 %s14, 1
        %s205 = sand.u32 %s27, 1
        %s206 = scalar_lea.sflag [#allocation3], %s205
        %s207 = sand.u32 %s27, 1
        %s208 = smul.addr %s207, 8
        %s209 = scalar_lea.vmem [#allocation2], %s208
        // Predicated region
        $region37: #{tpu_custom_call.1} parent=35 // pred_check
          %p210 = pneg %p40
        $region38: #{tpu_custom_call.1} parent=35 // pred_check_branch
          %212 = sbr.rel (%p210) target = $region40
        $region39: #{tpu_custom_call.1} parent=35 // pred_region
          %213 = dma.done %s206, 128
        $region40: #{tpu_custom_call.1} parent=35 // pred_fallthru
          _
        // Predicated region
        $region41: #{tpu_custom_call.1} parent=35 // pred_check
          %p214 = pneg %p61
        $region42: #{tpu_custom_call.1} parent=35 // pred_check_branch
          %216 = sbr.rel (%p214) target = $region44
        $region43: #{tpu_custom_call.1} parent=35 // pred_region
          %217 = dma.done [#allocation5], 512
        $region44: #{tpu_custom_call.1} parent=35 // pred_fallthru
          _
        // Predicated region
        $region45: #{tpu_custom_call.1} parent=35 // pred_check
          %p218 = pneg %p82
        $region46: #{tpu_custom_call.1} parent=35 // pred_check_branch
          %220 = sbr.rel (%p218) target = $region48
        $region47: #{tpu_custom_call.1} parent=35 // pred_region
          %221 = dma.done [#allocation5], 256
        $region48: #{tpu_custom_call.1} parent=35 // pred_fallthru
          _
        %s222 = sand.u32 %s27, 1
        %s223 = scalar_lea.sflag [#allocation3], %s222
        %s224 = sand.u32 %s27, 1
        %s225 = smul.addr %s224, 8
        %s226 = scalar_lea.vmem [#allocation2], %s225
        %p227 = pneg %p40
        %p228 = pneg %p37
        %p229 = pneg %p61
        %p230 = pneg %p58
        %p231 = pneg %p82
        %p232 = pneg %p79
        %p233 = pneg %p103
        %p234 = pneg %p100
        %p235 = pneg %p129
        %p236 = pneg %p126
        %p237 = scmp.lt.s32.totalorder %s19, 1
        %s238 = scalar_select %p237, %s19, 1
        %s239 = smul.addr %s238, 3
        %s240 = smul.addr %s239, 8
        %s241 = scalar_lea.vmem %s4, %s240
        %p242 = scmp.lt.s32.totalorder %s19, 1
        %s243 = scalar_select %p242, %s19, 1
        %s244 = smul.addr %s243, 3
        %s245 = smul.addr %s244, 8
        %s246 = scalar_lea.vmem %s4, %s245
        %v248 = vld [vmem:[%s209] sm:$0xf]
        %v249 = vld [vmem:[%s209 + $0x4] sm:$0xf]
        %v250 = vld [vmem:[#allocation4] sm:$0xf]
        %v251 = vld [vmem:[#allocation4 + $0x4] sm:$0xf]
        %v252 = vld [vmem:[#allocation4 + $0x8] sm:$0xf]
        %v253 = vld [vmem:[#allocation4 + $0xc] sm:$0xf]
        %v254 = vld [vmem:[#allocation4 + $0x10] sm:$0xf]
        %v255 = vld [vmem:[#allocation4 + $0x14] sm:$0xf]
        %v256 = vld [vmem:[#allocation4 + $0x18] sm:$0xf]
        %v257 = vld [vmem:[#allocation4 + $0x1c] sm:$0xf]
        %v258 = vld [vmem:[%s3] sm:$0x1]
        %259 = vst [vmem:[%s246] sm:$0x1] %v258
        %v260 = vld [vmem:[#allocation6] sm:$0xff]
        %v261 = vld [vmem:[#allocation6 + $0x8] sm:$0xff]
        %v264 = vunpack.c.l.b16 %v248
        %v265 = vunpack.c.l.b16 %v249
        %v266 = vpack.c.b16 %v265, %v264
        %v275 = vunpack.c.l.b16 %v250
        %v276 = vunpack.c.l.b16 %v251
        %v277 = vunpack.c.l.b16 %v252
        %v278 = vunpack.c.l.b16 %v253
        %v279 = vunpack.c.l.b16 %v254
        %v280 = vunpack.c.l.b16 %v255
        %v281 = vunpack.c.l.b16 %v256
        %v282 = vunpack.c.l.b16 %v257
        %v283 = vpack.c.b16 %v276, %v275
        %v284 = vpack.c.b16 %v278, %v277
        %v285 = vpack.c.b16 %v280, %v279
        %v286 = vpack.c.b16 %v282, %v281
        %vm291 = vcmask 523264
        %v293 = vsel %vm291, %v266, 0
        %295 = vmatprep.subr.bf16.mxu0 0
        %296 = vmatpush1.bf16.msra.mxu0 %v283
        %297 = vmatprep.subr.bf16.mxu0 0
        %298 = vmatpush1.bf16.msra.mxu0 %v284
        %299 = vmatprep.subr.bf16.mxu0 0
        %300 = vmatpush1.bf16.msra.mxu0 %v285
        %301 = vmatprep.subr.bf16.mxu0 0
        %302 = vmatpush1.bf16.msra.mxu0 %v286
        %303 = vmatprep.subr.bf16.mxu0 0
        %304 = vmatpush1.bf16.msra.mxu0 0
        %305 = vmatprep.subr.bf16.mxu0 0
        %306 = vmatpush1.bf16.msra.mxu0 0
        %307 = vmatprep.subr.bf16.mxu0 0
        %308 = vmatpush1.bf16.msra.mxu0 0
        %309 = vmatprep.subr.bf16.mxu0 0
        %310 = vmatpush1.bf16.msra.mxu0 0
        %311 = vmatprep.subr.bf16.mxu0 0
        %312 = vmatpush1.bf16.msra.mxu0 0
        %313 = vmatprep.subr.bf16.mxu0 0
        %314 = vmatpush1.bf16.msra.mxu0 0
        %315 = vmatprep.subr.bf16.mxu0 0
        %316 = vmatpush1.bf16.msra.mxu0 0
        %317 = vmatprep.subr.bf16.mxu0 0
        %318 = vmatpush1.bf16.msra.mxu0 0
        %319 = vmatprep.subr.bf16.mxu0 0
        %320 = vmatpush1.bf16.msra.mxu0 0
        %321 = vmatprep.subr.bf16.mxu0 0
        %322 = vmatpush1.bf16.msra.mxu0 0
        %323 = vmatprep.subr.bf16.mxu0 0
        %324 = vmatpush1.bf16.msra.mxu0 0
        %325 = vmatprep.subr.bf16.mxu0 0
        %326 = vmatpush1.bf16.msra.mxu0 0
        %327 = vmatprep.mubr.bf16.mxu0 0
        %328 = vmatmul.mubr.bf16.gmra.mrb[0].mxu0 %v293
        %v329 = vpop.f32.mrb[0].mxu0
        %v330 = vadd.f32 %v260, %v329
        %v331 = vpop.f32.mrb[0].mxu0
        %v332 = vpop.f32.mrb[0].mxu0
        %v333 = vadd.f32 %v261, %v332
        %v334 = vpop.f32.mrb[0].mxu0
        %335 = vdwg.mxu0
        %336 = vst [vmem:[%s246 + $0x1] sm:$0xff] %v330
        %337 = vst [vmem:[%s246 + $0x9] sm:$0xff] %v333
        %p338 = scmp.lt.s32.totalorder %s19, 1
        %s339 = scalar_select %p338, %s19, 1
        %s340 = smul.addr %s339, 3
        %s341 = smul.addr %s340, 8
        %s342 = scalar_lea.vmem %s4, %s341
        // Predicated region
        $region49: #{tpu_custom_call.1} parent=35 // pred_check
          %p343 = pneg %p126
        $region50: #{tpu_custom_call.1} parent=35 // pred_check_branch
          %345 = sbr.rel (%p343) target = $region52
        $region51: #{tpu_custom_call.1} parent=35 // pred_region
          _
        $region52: #{tpu_custom_call.1} parent=35 // pred_fallthru
          _
      $region36: #{tpu_custom_call.1} parent=5 // pred_fallthru
        _
      %p346 = scmp.le.s32.totalorder 2, %s14
      // Predicated region
      $region53: #{tpu_custom_call.1} parent=5 // pred_check
        %p347 = pneg %p346
      $region54: #{tpu_custom_call.1} parent=5 // pred_check_branch
        %349 = sbr.rel (%p347) target = $region56
      $region55: #{tpu_custom_call.1} parent=5 // pred_region
        %s350 = ssub.s32 %s14, 2
        // Predicated region
        $region57: #{tpu_custom_call.1} parent=55 // pred_check
          %p351 = pneg %p132
        $region58: #{tpu_custom_call.1} parent=55 // pred_check_branch
          %353 = sbr.rel (%p351) target = $region60
        $region59: #{tpu_custom_call.1} parent=55 // pred_region
          %p354 = scmp.lt.s32.totalorder %s20, 1
          %s355 = scalar_select %p354, %s20, 1
          %s356 = smul.addr %s355, 3
          %s357 = smul.addr %s356, 8
          %s358 = scalar_lea.vmem %s4, %s357
        $region60: #{tpu_custom_call.1} parent=55 // pred_fallthru
          _
      $region56: #{tpu_custom_call.1} parent=5 // pred_fallthru
        _
    $region6: #{tpu_custom_call.1} parent=1 // loop_footer
      %s18 = sadd.s32 1, %s14
    $region7: #{tpu_custom_call.1} parent=1 // loop_footer_branch
      %13 = sbr.rel target = $region3
    $region8: #{tpu_custom_call.1} parent=1 // loop_exit
      _
    %359 = vsyncpa [#allocation3], 1
    %s360 = scalar_lea.sflag [#allocation3], 1
    %361 = vsyncpa %s360, 1
    %362 = vsyncpa [#allocation5], 1

</llo_original>
